<compile_context>
chip_gen: v6e
topology: v6e:2x2x1
jax: 0.10.0
libtpu: 0.0.40
codegen_flags: <defaults>
</compile_context>

<pallas_src>
import functools
from typing import NamedTuple, Tuple

import numpy as np
import jax
import jax.numpy as jnp
from jax.experimental import pallas as pl
from jax.experimental.pallas import tpu as pltpu

LANE = 128          # vreg lane width (last dim)
SUBLANE_BF16 = 16   # bf16 packs 16 rows per vreg sublane group


def _round_up(n, m):
    return ((n + m - 1) // m) * m


@functools.lru_cache(maxsize=None)
def _tpu_config():
    """Return (vmem_capacity_bytes, num_tensorcores_per_chip) with safe fallbacks."""
    kind = ""
    try:
        kind = jax.devices()[0].device_kind.lower()
    except Exception:
        pass
    vmem_cap = None
    try:
        vmem_cap = int(pltpu.get_tpu_info().vmem_capacity_bytes)
    except Exception:
        vmem_cap = None
    if vmem_cap is None:
        # v5e/v6e: 128 MiB per TensorCore; v7x: 64 MiB.  Conservative default: 64 MiB.
        vmem_cap = (128 << 20) if ("v5" in kind or "v6" in kind) else (64 << 20)
    num_tc = 2 if "v7" in kind else 1
    return vmem_cap, num_tc


# ---------------------------------------------------------------------------
# Fused Pallas kernel: act = relu?(act @ W_l + b_l) for all layers, in VMEM.
# ---------------------------------------------------------------------------
def _make_fused_mlp_kernel(n_layers, relu_flags):
    def kernel(*refs):
        x_ref = refs[0]
        o_ref = refs[1 + 2 * n_layers]
        act = x_ref[...]                                   # bf16 [tm, D0p]
        for li in range(n_layers):
            w_ref = refs[1 + 2 * li]                       # bf16 [Din_p, Dout_p]
            b_ref = refs[2 + 2 * li]                       # f32  [1, Dout_p]
            # MXU matmul with f32 accumulation; bias/ReLU in f32 (v5e-safe).
            y = jnp.dot(act, w_ref[...], preferred_element_type=jnp.float32)
            y = y + b_ref[...]
            if relu_flags[li]:
                y = jnp.maximum(y, 0.0)
            act = y.astype(jnp.bfloat16) if li < n_layers - 1 else y
        o_ref[...] = act.astype(o_ref.dtype)
    return kernel


# ---------------------------------------------------------------------------
# One-time parameter preparation (hoisted out of the forward path).
# ---------------------------------------------------------------------------
class PreparedMLP(NamedTuple):
    weights: Tuple          # ((w bf16 [din_p, dout_p], b f32 [1, dout_p]), ...)
    relu_flags: Tuple[bool, ...]
    in_dim: int
    out_dim: int


def prepare_mlp_params(params, hidden_depth):
    """Zero-pad every feature dim to a 128-lane multiple and cast once."""
    n_layers = len(params)
    expected = 1 if hidden_depth == 0 else hidden_depth + 1
    assert n_layers == expected, (
        f"hidden_depth={hidden_depth} implies {expected} Linear layers, got {n_layers}")
    relu_flags = tuple((hidden_depth > 0) and (li != n_layers - 1)
                       for li in range(n_layers))
    padded = []
    for w, b in params:
        dp_in = _round_up(w.shape[0], LANE)
        dp_out = _round_up(w.shape[1], LANE)
        w_p = jnp.pad(w, ((0, dp_in - w.shape[0]), (0, dp_out - w.shape[1])))
        b_p = jnp.pad(b, (0, dp_out - b.shape[0])).reshape(1, dp_out)
        padded.append((w_p.astype(jnp.bfloat16), b_p.astype(jnp.float32)))
    return PreparedMLP(weights=tuple(padded), relu_flags=relu_flags,
                       in_dim=params[0][0].shape[0], out_dim=params[-1][0].shape[1])


# ---------------------------------------------------------------------------
# Forward pass: pick grid-less vs. batch-tiled plan, one pallas_call.
# ---------------------------------------------------------------------------
def mlp_forward(prepared: PreparedMLP, x, *, max_batch_tile=None, out_dtype=None):
    B, Din = x.shape
    assert Din == prepared.in_dim
    padded = prepared.weights
    n_layers = len(padded)
    out_dtype = x.dtype if out_dtype is None else out_dtype   # bf16 halves writeback if OK
    out_bytes = np.dtype(out_dtype).itemsize

    din0_p = padded[0][0].shape[0]
    dout_p = [w.shape[1] for w, _ in padded]
    dout_last_p = dout_p[-1]

    vmem_cap, num_tc = _tpu_config()
    vmem_budget = (vmem_cap * 3) // 4                 # ~48 MiB on v7x, ~96 MiB on v5e/v6e
    if max_batch_tile is None:
        max_batch_tile = 512 if vmem_cap >= (96 << 20) else 256

    wb_bytes = sum(w.size * 2 + b.size * 4 for w, b in padded)  # single copy of weights
    kernel = _make_fused_mlp_kernel(n_layers, prepared.relu_flags)
    flat_wb = [t for wb in padded for t in wb]

    force_split = (num_tc >= 2) and (B >= 32)         # use both v7x TCs for moderate batches
    Bp16 = _round_up(B, SUBLANE_BF16)

    if (not force_split) and Bp16 <= max_batch_tile:
        # ---- grid-less small-batch path: whole padded problem resident in VMEM ----
        x_p = jnp.pad(x, ((0, Bp16 - B), (0, din0_p - Din))).astype(jnp.bfloat16)
        vmem_bytes = (wb_bytes + Bp16 * din0_p * 2 + Bp16 * dout_last_p * out_bytes
                      + 3 * Bp16 * max(dout_p) * 4)
        params_kw = {}
        if vmem_bytes > (24 << 20):                   # only override when default is tight
            params_kw["compiler_params"] = pltpu.CompilerParams(
                vmem_limit_bytes=int(min(2 * vmem_bytes, vmem_budget)))
        out_p = pl.pallas_call(
            kernel,
            out_shape=jax.ShapeDtypeStruct((Bp16, dout_last_p), out_dtype),
            **params_kw,
        )(x_p, *flat_wb)
        return out_p[:B, :prepared.out_dim]

    # ---- batch-tiled path: stream x/out tiles, weights stay VMEM-resident ----
    n_tiles = max(pl.cdiv(B, max_batch_tile), 2 if force_split else 1)
    if num_tc >= 2 and (n_tiles % num_tc):
        n_tiles += 1                                   # balance tiles across TensorCores
    tm = _round_up(pl.cdiv(B, n_tiles), SUBLANE_BF16)

    def _tiled_vmem(tm_):
        # Constant-index weight/bias blocks are still double-buffered by the
        # pipeline, so count them twice; x/out tiles are double-buffered too.
        # (pipeline_mode=pl.Buffered(1) on the weight specs would halve the
        #  resident footprint; kept default for toolchain compatibility.)
        return (2 * wb_bytes
                + 2 * (tm_ * din0_p * 2 + tm_ * dout_last_p * out_bytes)
                + 3 * tm_ * max(dout_p) * 4)

    while _tiled_vmem(tm) > vmem_budget and tm > SUBLANE_BF16:
        tm = max(_round_up(tm // 2, SUBLANE_BF16), SUBLANE_BF16)
    if _tiled_vmem(tm) > vmem_budget:
        # TODO(synk): add a K/N-tiling grid axis ("arbitrary", last) + f32 VMEM
        # accumulator for MLPs whose padded weights alone exceed the VMEM budget
        # (not needed for SAC-sized networks).
        raise NotImplementedError("MLP too large for the all-resident VMEM plan")
    n_tiles = pl.cdiv(B, tm)

    # Pad only the feature dim; the batch stays ragged (no padded copy of x).
    # The last (partial) tile is handled by Pallas' out-of-bounds block masking:
    # garbage rows are computed but never written back.
    if Din == din0_p:
        x_p = x.astype(jnp.bfloat16)
    else:
        x_p = jnp.pad(x, ((0, 0), (0, din0_p - Din))).astype(jnp.bfloat16)

    vmem_bytes = _tiled_vmem(tm)
    vmem_limit = int(min(max(2 * vmem_bytes, 16 << 20), vmem_budget))

    const_map = lambda i: (0, 0)
    in_specs = [pl.BlockSpec((tm, din0_p), lambda i: (i, 0))]
    for w_p, b_p in padded:
        in_specs.append(pl.BlockSpec(w_p.shape, const_map))   # VMEM-resident weights
        in_specs.append(pl.BlockSpec(b_p.shape, const_map))

    out_p = pl.pallas_call(
        kernel,
        out_shape=jax.ShapeDtypeStruct((B, dout_last_p), out_dtype),
        grid=(n_tiles,),
        in_specs=in_specs,
        out_specs=pl.BlockSpec((tm, dout_last_p), lambda i: (i, 0)),
        compiler_params=pltpu.CompilerParams(
            dimension_semantics=("parallel",),        # shard batch tiles on v7x's 2 TCs
            vmem_limit_bytes=vmem_limit),
    )(x_p, *flat_wb)
    return out_p[:, :prepared.out_dim]


# ---------------------------------------------------------------------------
# Parameter init matching weight_init: orthogonal weights, zero bias.
# ---------------------------------------------------------------------------
def orthogonal_(key, out_dim, in_dim, dtype=jnp.float32):
    """nn.init.orthogonal_ for an [out, in] matrix, returned as [in, out]."""
    rows, cols = out_dim, in_dim
    flat = jax.random.normal(key, (max(rows, cols), min(rows, cols)), dtype)
    q, r = jnp.linalg.qr(flat)
    d = jnp.diag(r)
    q = q * jnp.where(d == 0, 1.0, jnp.sign(d))[None, :]   # guard sign(0)==0
    if rows < cols:
        q = q.T
    w_out_in = q[:rows, :cols]
    return w_out_in.T.astype(dtype)                         # -> [in, out]


def init_mlp_params(key, input_dim, hidden_dim, output_dim, hidden_depth):
    """Replicates mlp(...) layer structure; biases are zero."""
    if hidden_depth == 0:
        dims = [(input_dim, output_dim)]
    else:
        dims = [(input_dim, hidden_dim)]
        dims += [(hidden_dim, hidden_dim)] * (hidden_depth - 1)
        dims += [(hidden_dim, output_dim)]
    keys = jax.random.split(key, len(dims))
    params = []
    for k, (din, dout) in zip(keys, dims):
        params.append((orthogonal_(k, dout, din), jnp.zeros((dout,), jnp.float32)))
    return params
    # TODO(synk): output_mod (optional trailing module) not modeled — defaults to None.


# ---------------------------------------------------------------------------
if __name__ == "__main__":
    batch = 8
    input_dim = 32
    hidden_dim = 32
    output_dim = 16
    hidden_depth = 2

    key = jax.random.PRNGKey(0)
    kx, kp, kx2 = jax.random.split(key, 3)
    x = jax.random.normal(kx, (batch, input_dim), jnp.float32)
    params = init_mlp_params(kp, input_dim, hidden_dim, output_dim, hidden_depth)
    prepared = prepare_mlp_params(params, hidden_depth)   # pad/cast ONCE, reuse per call

    def ref_bf16(xv):
        """Reference mirroring the kernel numerics (bf16 operands, f32 accumulate)."""
        r = xv
        for li, (w, b) in enumerate(params):
            a = r.astype(jnp.bfloat16).astype(jnp.float32)
            wf = w.astype(jnp.bfloat16).astype(jnp.float32)
            r = a @ wf + b
            if hidden_depth > 0 and li != len(params) - 1:
                r = jnp.maximum(r, 0.0)
        return r

    # --- small-batch path (grid-less on 1-TC chips, 2 parallel tiles on v7x) ---
    out = jax.block_until_ready(mlp_forward(prepared, x))
    assert out.shape == (batch, output_dim)
    ref = ref_bf16(x)
    assert jnp.allclose(out, ref, atol=2e-3, rtol=2e-3), float(jnp.max(jnp.abs(out - ref)))

    # --- ragged batch-tiled path (forced small tile to exercise the grid + OOB tail) ---
    batch2 = 300   # not a multiple of the tile -> exercises the masked last tile
    x2 = jax.random.normal(kx2, (batch2, input_dim), jnp.float32)
    out2 = jax.block_until_ready(mlp_forward(prepared, x2, max_batch_tile=128))
    assert out2.shape == (batch2, output_dim)
    ref2 = ref_bf16(x2)
    assert jnp.allclose(out2, ref2, atol=2e-3, rtol=2e-3), float(jnp.max(jnp.abs(out2 - ref2)))

    # Loose sanity check against the pure-f32 reference (bf16 rounding only).
    ref32 = x
    for li, (w, b) in enumerate(params):
        ref32 = ref32 @ w + b
        if hidden_depth > 0 and li != len(params) - 1:
            ref32 = jnp.maximum(ref32, 0.0)
    rel = jnp.linalg.norm(out - ref32) / (jnp.linalg.norm(ref32) + 1e-8)
    assert float(rel) < 0.05, float(rel)

    print("KERNEL_OK")
</pallas_src>

<mosaic_0001>
module attributes {stable_mosaic.version = 11 : i64} {
  func.func @kernel(%arg0: memref<16x128xbf16, #tpu.memory_space<vmem>>, %arg1: memref<128x128xbf16, #tpu.memory_space<vmem>>, %arg2: memref<1x128xf32, #tpu.memory_space<vmem>>, %arg3: memref<128x128xbf16, #tpu.memory_space<vmem>>, %arg4: memref<1x128xf32, #tpu.memory_space<vmem>>, %arg5: memref<128x128xbf16, #tpu.memory_space<vmem>>, %arg6: memref<1x128xf32, #tpu.memory_space<vmem>>, %arg7: memref<16x128xf32, #tpu.memory_space<vmem>>) attributes {dimension_semantics = [], scalar_prefetch = 0 : i64, scratch_operands = 0 : i64, tpu.core_type = #tpu.core_type<tc>} {
    %c0 = arith.constant 0 : index
    %c0_0 = arith.constant 0 : index
    %0 = vector.load %arg0[%c0, %c0_0] : memref<16x128xbf16, #tpu.memory_space<vmem>>, vector<16x128xbf16>
    %c0_1 = arith.constant 0 : index
    %c0_2 = arith.constant 0 : index
    %1 = vector.load %arg1[%c0_1, %c0_2] : memref<128x128xbf16, #tpu.memory_space<vmem>>, vector<128x128xbf16>
    %cst = arith.constant dense<0.000000e+00> : vector<16x128xf32>
    %2 = tpu.matmul %0, %1, %cst {dimension_numbers = #tpu.dot_dimension_numbers<[1], [0], [0], [1], [0, 0, 1, 1], [], []>} : vector<16x128xbf16>, vector<128x128xbf16>, vector<16x128xf32> -> vector<16x128xf32>
    %c0_3 = arith.constant 0 : index
    %c0_4 = arith.constant 0 : index
    %3 = vector.load %arg2[%c0_3, %c0_4] : memref<1x128xf32, #tpu.memory_space<vmem>>, vector<1x128xf32>
    %4 = vector.broadcast %3 : vector<1x128xf32> to vector<16x128xf32>
    %5 = arith.addf %2, %4 : vector<16x128xf32>
    %cst_5 = arith.constant 0.000000e+00 : f32
    %6 = vector.broadcast %cst_5 : f32 to vector<16x128xf32>
    %7 = arith.maximumf %5, %6 : vector<16x128xf32>
    %8 = arith.truncf %7 : vector<16x128xf32> to vector<16x128xbf16>
    %c0_6 = arith.constant 0 : index
    %c0_7 = arith.constant 0 : index
    %9 = vector.load %arg3[%c0_6, %c0_7] : memref<128x128xbf16, #tpu.memory_space<vmem>>, vector<128x128xbf16>
    %cst_8 = arith.constant dense<0.000000e+00> : vector<16x128xf32>
    %10 = tpu.matmul %8, %9, %cst_8 {dimension_numbers = #tpu.dot_dimension_numbers<[1], [0], [0], [1], [0, 0, 1, 1], [], []>} : vector<16x128xbf16>, vector<128x128xbf16>, vector<16x128xf32> -> vector<16x128xf32>
    %c0_9 = arith.constant 0 : index
    %c0_10 = arith.constant 0 : index
    %11 = vector.load %arg4[%c0_9, %c0_10] : memref<1x128xf32, #tpu.memory_space<vmem>>, vector<1x128xf32>
    %12 = vector.broadcast %11 : vector<1x128xf32> to vector<16x128xf32>
    %13 = arith.addf %10, %12 : vector<16x128xf32>
    %cst_11 = arith.constant 0.000000e+00 : f32
    %14 = vector.broadcast %cst_11 : f32 to vector<16x128xf32>
    %15 = arith.maximumf %13, %14 : vector<16x128xf32>
    %16 = arith.truncf %15 : vector<16x128xf32> to vector<16x128xbf16>
    %c0_12 = arith.constant 0 : index
    %c0_13 = arith.constant 0 : index
    %17 = vector.load %arg5[%c0_12, %c0_13] : memref<128x128xbf16, #tpu.memory_space<vmem>>, vector<128x128xbf16>
    %cst_14 = arith.constant dense<0.000000e+00> : vector<16x128xf32>
    %18 = tpu.matmul %16, %17, %cst_14 {dimension_numbers = #tpu.dot_dimension_numbers<[1], [0], [0], [1], [0, 0, 1, 1], [], []>} : vector<16x128xbf16>, vector<128x128xbf16>, vector<16x128xf32> -> vector<16x128xf32>
    %c0_15 = arith.constant 0 : index
    %c0_16 = arith.constant 0 : index
    %19 = vector.load %arg6[%c0_15, %c0_16] : memref<1x128xf32, #tpu.memory_space<vmem>>, vector<1x128xf32>
    %20 = vector.broadcast %19 : vector<1x128xf32> to vector<16x128xf32>
    %21 = arith.addf %18, %20 : vector<16x128xf32>
    %c0_17 = arith.constant 0 : index
    %c0_18 = arith.constant 0 : index
    %22 = vector.load %arg7[%c0_17, %c0_18] : memref<16x128xf32, #tpu.memory_space<vmem>>, vector<16x128xf32>
    tpu.vector_store %arg7[%c0_17, %c0_18], %21 {strides = array<i32>} : memref<16x128xf32, #tpu.memory_space<vmem>>, vector<16x128xf32>,
    return
  }
}

</mosaic_0001>

<llo_original>
// kernel: tpu_custom_call.1
$region0: #{tpu_custom_call.1}
  #allocation0 [shape = 'u32[]', space=smem, size = 0x4, offset = 0x4, fixed_abs, tag = 'smem constant byte address 0x4 - core index']
  #allocation1 [shape = 'u32[144,128]{1,0:T(1,128)}', space=vmem, size = 0x12000, scoped, tag = 'internal scratch']
  %s0 = inlined_call_operand.hbm [shape: bf16[16,128], index: 0, kind: input, shape index: {}]
  %s1 = inlined_call_operand.hbm [shape: bf16[128,128], index: 1, kind: input, shape index: {}]
  %s2 = inlined_call_operand.vmem [shape: f32[1,128], index: 2, kind: input, shape index: {}]
  %s3 = inlined_call_operand.hbm [shape: bf16[128,128], index: 3, kind: input, shape index: {}]
  %s4 = inlined_call_operand.vmem [shape: f32[1,128], index: 4, kind: input, shape index: {}]
  %s5 = inlined_call_operand.hbm [shape: bf16[128,128], index: 5, kind: input, shape index: {}]
  %s6 = inlined_call_operand.vmem [shape: f32[1,128], index: 6, kind: input, shape index: {}]
  %s7 = inlined_call_operand.hbm [shape: f32[16,128], index: 7, kind: output, shape index: {}]
  %s8 = sld [smem:[#allocation0]]
  $region54: #{tpu_custom_call.1} parent=0
    _
  %s10 = ssub.s32 1, %s8
  %s11 = scalar_select 0, %s10, %s8
  $region1: #{tpu_custom_call.1} parent=0
    #allocation2 [shape = 'u8[4096]{0}', space=vmem, size = 0x1000, scoped, tag = 'input window, operand 0, single buffered']
    #allocation3 [shape = 's32[1]{0}', space=sflag, size = 0x4, scoped, tag = 'scoped memory for tpu_custom_call.1']
    #allocation4 [shape = 's32[1]{0}', space=sflag, size = 0x4, scoped, tag = 'scoped memory for tpu_custom_call.1']
    #allocation5 [shape = 'u8[32768]{0}', space=vmem, size = 0x8000, scoped, tag = 'input window, operand 1, single buffered']
    #allocation6 [shape = 's32[1]{0}', space=sflag, size = 0x4, scoped, tag = 'scoped memory for tpu_custom_call.1']
    #allocation7 [shape = 'u8[32768]{0}', space=vmem, size = 0x8000, scoped, tag = 'input window, operand 3, single buffered']
    #allocation8 [shape = 'u8[32768]{0}', space=vmem, size = 0x8000, scoped, tag = 'input window, operand 5, single buffered']
    #allocation9 [shape = 's32[1]{0}', space=sflag, size = 0x4, scoped, tag = 'scoped memory for tpu_custom_call.1']
    #allocation10 [shape = 'u8[8192]{0}', space=vmem, size = 0x2000, scoped, tag = 'output window, operand 0, single buffered']
    %12 = vsyncpa [#allocation3], 0
    %13 = vsyncpa [#allocation6], 0
    %14 = vsyncpa [#allocation9], 0
    %15 = vsyncpa [#allocation4], 0
    // Predicated region
    $region2: #{tpu_custom_call.1} parent=1 // pred_check
      _
    $region3: #{tpu_custom_call.1} parent=1 // pred_check_branch
      %17 = sbr.rel (0) target = $region5
    $region4: #{tpu_custom_call.1} parent=1 // pred_region
      %s19 = ssub.s32 128, 128
      %20 = vsyncadd [#allocation3], %s19
      %s21 = sshll.u32 [#allocation2], 4
      %s22 = int_to_ptr.vmem [resolvable:$true] %s21
      %27 = dma.hbm_to_vmem [thread:$0]  %s0, 128, %s22, [#allocation3], 64, 64, 4
    $region5: #{tpu_custom_call.1} parent=1 // pred_fallthru
      _
    // Predicated region
    $region6: #{tpu_custom_call.1} parent=1 // pred_check
      _
    $region7: #{tpu_custom_call.1} parent=1 // pred_check_branch
      %29 = sbr.rel (0) target = $region9
    $region8: #{tpu_custom_call.1} parent=1 // pred_region
      %s31 = ssub.s32 1024, 1024
      %32 = vsyncadd [#allocation6], %s31
      %s33 = sshll.u32 [#allocation5], 4
      %s34 = int_to_ptr.vmem [resolvable:$true] %s33
      %39 = dma.hbm_to_vmem [thread:$0]  %s1, 1024, %s34, [#allocation6], 64, 64, 4
    $region9: #{tpu_custom_call.1} parent=1 // pred_fallthru
      _
    // Predicated region
    $region10: #{tpu_custom_call.1} parent=1 // pred_check
      _
    $region11: #{tpu_custom_call.1} parent=1 // pred_check_branch
      %41 = sbr.rel (0) target = $region13
    $region12: #{tpu_custom_call.1} parent=1 // pred_region
      _
    $region13: #{tpu_custom_call.1} parent=1 // pred_fallthru
      _
    // Predicated region
    $region14: #{tpu_custom_call.1} parent=1 // pred_check
      _
    $region15: #{tpu_custom_call.1} parent=1 // pred_check_branch
      %43 = sbr.rel (0) target = $region17
    $region16: #{tpu_custom_call.1} parent=1 // pred_region
      %s45 = ssub.s32 1024, 1024
      %46 = vsyncadd [#allocation6], %s45
      %s47 = sshll.u32 [#allocation7], 4
      %s48 = int_to_ptr.vmem [resolvable:$true] %s47
      %53 = dma.hbm_to_vmem [thread:$0]  %s3, 1024, %s48, [#allocation6], 64, 64, 4
    $region17: #{tpu_custom_call.1} parent=1 // pred_fallthru
      _
    // Predicated region
    $region18: #{tpu_custom_call.1} parent=1 // pred_check
      _
    $region19: #{tpu_custom_call.1} parent=1 // pred_check_branch
      %55 = sbr.rel (0) target = $region21
    $region20: #{tpu_custom_call.1} parent=1 // pred_region
      _
    $region21: #{tpu_custom_call.1} parent=1 // pred_fallthru
      _
    // Predicated region
    $region22: #{tpu_custom_call.1} parent=1 // pred_check
      _
    $region23: #{tpu_custom_call.1} parent=1 // pred_check_branch
      %57 = sbr.rel (0) target = $region25
    $region24: #{tpu_custom_call.1} parent=1 // pred_region
      %s59 = ssub.s32 1024, 1024
      %60 = vsyncadd [#allocation9], %s59
      %s61 = sshll.u32 [#allocation8], 4
      %s62 = int_to_ptr.vmem [resolvable:$true] %s61
      %67 = dma.hbm_to_vmem [thread:$0]  %s5, 1024, %s62, [#allocation9], 64, 64, 4
    $region25: #{tpu_custom_call.1} parent=1 // pred_fallthru
      _
    // Predicated region
    $region26: #{tpu_custom_call.1} parent=1 // pred_check
      _
    $region27: #{tpu_custom_call.1} parent=1 // pred_check_branch
      %69 = sbr.rel (0) target = $region29
    $region28: #{tpu_custom_call.1} parent=1 // pred_region
      _
    $region29: #{tpu_custom_call.1} parent=1 // pred_fallthru
      _
    // Predicated region
    $region30: #{tpu_custom_call.1} parent=1 // pred_check
      _
    $region31: #{tpu_custom_call.1} parent=1 // pred_check_branch
      %71 = sbr.rel (0) target = $region33
    $region32: #{tpu_custom_call.1} parent=1 // pred_region
      %72 = dma.done [#allocation3], 128
    $region33: #{tpu_custom_call.1} parent=1 // pred_fallthru
      _
    // Predicated region
    $region34: #{tpu_custom_call.1} parent=1 // pred_check
      _
    $region35: #{tpu_custom_call.1} parent=1 // pred_check_branch
      %74 = sbr.rel (0) target = $region37
    $region36: #{tpu_custom_call.1} parent=1 // pred_region
      %75 = dma.done [#allocation6], 1024
    $region37: #{tpu_custom_call.1} parent=1 // pred_fallthru
      _
    // Predicated region
    $region38: #{tpu_custom_call.1} parent=1 // pred_check
      _
    $region39: #{tpu_custom_call.1} parent=1 // pred_check_branch
      %77 = sbr.rel (0) target = $region41
    $region40: #{tpu_custom_call.1} parent=1 // pred_region
      %78 = dma.done [#allocation6], 1024
    $region41: #{tpu_custom_call.1} parent=1 // pred_fallthru
      _
    // Predicated region
    $region42: #{tpu_custom_call.1} parent=1 // pred_check
      _
    $region43: #{tpu_custom_call.1} parent=1 // pred_check_branch
      %80 = sbr.rel (0) target = $region45
    $region44: #{tpu_custom_call.1} parent=1 // pred_region
      %81 = dma.done [#allocation9], 1024
    $region45: #{tpu_custom_call.1} parent=1 // pred_fallthru
      _
    %v83 = vld [vmem:[#allocation2] sm:$0xf]
    %v84 = vld [vmem:[#allocation2 + $0x4] sm:$0xf]
    %v85 = vld [vmem:[#allocation5] sm:$0xf]
    %v86 = vld [vmem:[#allocation5 + $0x4] sm:$0xf]
    %v87 = vld [vmem:[#allocation5 + $0x8] sm:$0xf]
    %v88 = vld [vmem:[#allocation5 + $0xc] sm:$0xf]
    %v89 = vld [vmem:[#allocation5 + $0x10] sm:$0xf]
    %v90 = vld [vmem:[#allocation5 + $0x14] sm:$0xf]
    %v91 = vld [vmem:[#allocation5 + $0x18] sm:$0xf]
    %v92 = vld [vmem:[#allocation5 + $0x1c] sm:$0xf]
    %v93 = vld [vmem:[#allocation5 + $0x20] sm:$0xf]
    %v94 = vld [vmem:[#allocation5 + $0x24] sm:$0xf]
    %v95 = vld [vmem:[#allocation5 + $0x28] sm:$0xf]
    %v96 = vld [vmem:[#allocation5 + $0x2c] sm:$0xf]
    %v97 = vld [vmem:[#allocation5 + $0x30] sm:$0xf]
    %v98 = vld [vmem:[#allocation5 + $0x34] sm:$0xf]
    %v99 = vld [vmem:[#allocation5 + $0x38] sm:$0xf]
    %v100 = vld [vmem:[#allocation5 + $0x3c] sm:$0xf]
    %v101 = vld [vmem:[%s2] sm:$0x1]
    %v103 = vlaneseq
    %v104 = vshrl.u32 %v103, 7
    %v105 = vsub.s32 0, %v104
    %v106 = vrot.slane %v101, %v105
    %v110 = vunpack.c.l.b16 %v83
    %v111 = vunpack.c.l.b16 %v84
    %v112 = vpack.c.b16 %v111, %v110
    %v130 = vunpack.c.l.b16 %v85
    %v131 = vunpack.c.l.b16 %v86
    %v132 = vunpack.c.l.b16 %v87
    %v133 = vunpack.c.l.b16 %v88
    %v134 = vunpack.c.l.b16 %v89
    %v135 = vunpack.c.l.b16 %v90
    %v136 = vunpack.c.l.b16 %v91
    %v137 = vunpack.c.l.b16 %v92
    %v138 = vunpack.c.l.b16 %v93
    %v139 = vunpack.c.l.b16 %v94
    %v140 = vunpack.c.l.b16 %v95
    %v141 = vunpack.c.l.b16 %v96
    %v142 = vunpack.c.l.b16 %v97
    %v143 = vunpack.c.l.b16 %v98
    %v144 = vunpack.c.l.b16 %v99
    %v145 = vunpack.c.l.b16 %v100
    %v146 = vpack.c.b16 %v131, %v130
    %v147 = vpack.c.b16 %v133, %v132
    %v148 = vpack.c.b16 %v135, %v134
    %v149 = vpack.c.b16 %v137, %v136
    %v150 = vpack.c.b16 %v139, %v138
    %v151 = vpack.c.b16 %v141, %v140
    %v152 = vpack.c.b16 %v143, %v142
    %v153 = vpack.c.b16 %v145, %v144
    %162 = vmatprep.subr.bf16.mxu0 0
    %163 = vmatpush1.bf16.msra.mxu0 %v153
    %164 = vmatprep.subr.bf16.mxu0 0
    %165 = vmatpush1.bf16.msra.mxu0 %v152
    %166 = vmatprep.subr.bf16.mxu0 0
    %167 = vmatpush1.bf16.msra.mxu0 %v151
    %168 = vmatprep.subr.bf16.mxu0 0
    %169 = vmatpush1.bf16.msra.mxu0 %v150
    %170 = vmatprep.subr.bf16.mxu0 0
    %171 = vmatpush1.bf16.msra.mxu0 %v149
    %172 = vmatprep.subr.bf16.mxu0 0
    %173 = vmatpush1.bf16.msra.mxu0 %v148
    %174 = vmatprep.subr.bf16.mxu0 0
    %175 = vmatpush1.bf16.msra.mxu0 %v147
    %176 = vmatprep.subr.bf16.mxu0 0
    %177 = vmatpush1.bf16.msra.mxu0 %v146
    %178 = vmatprep.subr.bf16.mxu0 0
    %179 = vmatpush2.bf16.msra.mxu0 0
    %180 = vmatprep.subr.bf16.mxu0 0
    %181 = vmatpush2.bf16.msra.mxu0 0
    %182 = vmatprep.subr.bf16.mxu0 0
    %183 = vmatpush2.bf16.msra.mxu0 0
    %184 = vmatprep.subr.bf16.mxu0 0
    %185 = vmatpush2.bf16.msra.mxu0 0
    %186 = vmatprep.subr.bf16.mxu0 0
    %187 = vmatpush2.bf16.msra.mxu0 0
    %188 = vmatprep.subr.bf16.mxu0 0
    %189 = vmatpush2.bf16.msra.mxu0 0
    %190 = vmatprep.subr.bf16.mxu0 0
    %191 = vmatpush2.bf16.msra.mxu0 0
    %192 = vmatprep.subr.bf16.mxu0 0
    %193 = vmatpush2.bf16.msra.mxu0 0
    %194 = vmatprep.mubr.bf16.mxu0 0
    %195 = vmatmul.mubr.bf16.gmra.mxu0 %v112
    %v196 = vpop.f32.mrf.mxu0
    %v197 = vadd.f32 %v106, %v196
    %v198 = vpop.f32.mrf.mxu0
    %v199 = vpop.f32.mrf.mxu0
    %v200 = vadd.f32 %v106, %v199
    %v201 = vpop.f32.mrf.mxu0
    %202 = vdwg.mxu0
    %v203 = vmax.f32 %v197, 0.0
    %v204 = vmax.f32 %v200, 0.0
    %v205 = vpack.c.bf16 %v204, %v203
    %v206 = vld [vmem:[#allocation7] sm:$0xf]
    %v207 = vld [vmem:[#allocation7 + $0x4] sm:$0xf]
    %v208 = vld [vmem:[#allocation7 + $0x8] sm:$0xf]
    %v209 = vld [vmem:[#allocation7 + $0xc] sm:$0xf]
    %v210 = vld [vmem:[#allocation7 + $0x10] sm:$0xf]
    %v211 = vld [vmem:[#allocation7 + $0x14] sm:$0xf]
    %v212 = vld [vmem:[#allocation7 + $0x18] sm:$0xf]
    %v213 = vld [vmem:[#allocation7 + $0x1c] sm:$0xf]
    %v214 = vld [vmem:[#allocation7 + $0x20] sm:$0xf]
    %v215 = vld [vmem:[#allocation7 + $0x24] sm:$0xf]
    %v216 = vld [vmem:[#allocation7 + $0x28] sm:$0xf]
    %v217 = vld [vmem:[#allocation7 + $0x2c] sm:$0xf]
    %v218 = vld [vmem:[#allocation7 + $0x30] sm:$0xf]
    %v219 = vld [vmem:[#allocation7 + $0x34] sm:$0xf]
    %v220 = vld [vmem:[#allocation7 + $0x38] sm:$0xf]
    %v221 = vld [vmem:[#allocation7 + $0x3c] sm:$0xf]
    %v222 = vld [vmem:[%s4] sm:$0x1]
    %v224 = vlaneseq
    %v225 = vshrl.u32 %v224, 7
    %v226 = vsub.s32 0, %v225
    %v227 = vrot.slane %v222, %v226
    %v245 = vunpack.c.l.b16 %v206
    %v246 = vunpack.c.l.b16 %v207
    %v247 = vunpack.c.l.b16 %v208
    %v248 = vunpack.c.l.b16 %v209
    %v249 = vunpack.c.l.b16 %v210
    %v250 = vunpack.c.l.b16 %v211
    %v251 = vunpack.c.l.b16 %v212
    %v252 = vunpack.c.l.b16 %v213
    %v253 = vunpack.c.l.b16 %v214
    %v254 = vunpack.c.l.b16 %v215
    %v255 = vunpack.c.l.b16 %v216
    %v256 = vunpack.c.l.b16 %v217
    %v257 = vunpack.c.l.b16 %v218
    %v258 = vunpack.c.l.b16 %v219
    %v259 = vunpack.c.l.b16 %v220
    %v260 = vunpack.c.l.b16 %v221
    %v261 = vpack.c.b16 %v246, %v245
    %v262 = vpack.c.b16 %v248, %v247
    %v263 = vpack.c.b16 %v250, %v249
    %v264 = vpack.c.b16 %v252, %v251
    %v265 = vpack.c.b16 %v254, %v253
    %v266 = vpack.c.b16 %v256, %v255
    %v267 = vpack.c.b16 %v258, %v257
    %v268 = vpack.c.b16 %v260, %v259
    %277 = vmatprep.subr.bf16.mxu0 0
    %278 = vmatpush1.bf16.msra.mxu0 %v268
    %279 = vmatprep.subr.bf16.mxu0 0
    %280 = vmatpush1.bf16.msra.mxu0 %v267
    %281 = vmatprep.subr.bf16.mxu0 0
    %282 = vmatpush1.bf16.msra.mxu0 %v266
    %283 = vmatprep.subr.bf16.mxu0 0
    %284 = vmatpush1.bf16.msra.mxu0 %v265
    %285 = vmatprep.subr.bf16.mxu0 0
    %286 = vmatpush1.bf16.msra.mxu0 %v264
    %287 = vmatprep.subr.bf16.mxu0 0
    %288 = vmatpush1.bf16.msra.mxu0 %v263
    %289 = vmatprep.subr.bf16.mxu0 0
    %290 = vmatpush1.bf16.msra.mxu0 %v262
    %291 = vmatprep.subr.bf16.mxu0 0
    %292 = vmatpush1.bf16.msra.mxu0 %v261
    %293 = vmatprep.subr.bf16.mxu0 0
    %294 = vmatpush2.bf16.msra.mxu0 0
    %295 = vmatprep.subr.bf16.mxu0 0
    %296 = vmatpush2.bf16.msra.mxu0 0
    %297 = vmatprep.subr.bf16.mxu0 0
    %298 = vmatpush2.bf16.msra.mxu0 0
    %299 = vmatprep.subr.bf16.mxu0 0
    %300 = vmatpush2.bf16.msra.mxu0 0
    %301 = vmatprep.subr.bf16.mxu0 0
    %302 = vmatpush2.bf16.msra.mxu0 0
    %303 = vmatprep.subr.bf16.mxu0 0
    %304 = vmatpush2.bf16.msra.mxu0 0
    %305 = vmatprep.subr.bf16.mxu0 0
    %306 = vmatpush2.bf16.msra.mxu0 0
    %307 = vmatprep.subr.bf16.mxu0 0
    %308 = vmatpush2.bf16.msra.mxu0 0
    %309 = vmatprep.mubr.bf16.mxu0 0
    %310 = vmatmul.mubr.bf16.gmra.mxu0 %v205
    %v311 = vpop.f32.mrf.mxu0
    %v312 = vadd.f32 %v227, %v311
    %v313 = vpop.f32.mrf.mxu0
    %v314 = vpop.f32.mrf.mxu0
    %v315 = vadd.f32 %v227, %v314
    %v316 = vpop.f32.mrf.mxu0
    %317 = vdwg.mxu0
    %v318 = vmax.f32 %v312, 0.0
    %v319 = vmax.f32 %v315, 0.0
    %v320 = vpack.c.bf16 %v319, %v318
    %v321 = vld [vmem:[#allocation8] sm:$0xf]
    %v322 = vld [vmem:[#allocation8 + $0x4] sm:$0xf]
    %v323 = vld [vmem:[#allocation8 + $0x8] sm:$0xf]
    %v324 = vld [vmem:[#allocation8 + $0xc] sm:$0xf]
    %v325 = vld [vmem:[#allocation8 + $0x10] sm:$0xf]
    %v326 = vld [vmem:[#allocation8 + $0x14] sm:$0xf]
    %v327 = vld [vmem:[#allocation8 + $0x18] sm:$0xf]
    %v328 = vld [vmem:[#allocation8 + $0x1c] sm:$0xf]
    %v329 = vld [vmem:[#allocation8 + $0x20] sm:$0xf]
    %v330 = vld [vmem:[#allocation8 + $0x24] sm:$0xf]
    %v331 = vld [vmem:[#allocation8 + $0x28] sm:$0xf]
    %v332 = vld [vmem:[#allocation8 + $0x2c] sm:$0xf]
    %v333 = vld [vmem:[#allocation8 + $0x30] sm:$0xf]
    %v334 = vld [vmem:[#allocation8 + $0x34] sm:$0xf]
    %v335 = vld [vmem:[#allocation8 + $0x38] sm:$0xf]
    %v336 = vld [vmem:[#allocation8 + $0x3c] sm:$0xf]
    %v337 = vld [vmem:[%s6] sm:$0x1]
    %v339 = vlaneseq
    %v340 = vshrl.u32 %v339, 7
    %v341 = vsub.s32 0, %v340
    %v342 = vrot.slane %v337, %v341
    %v360 = vunpack.c.l.b16 %v321
    %v361 = vunpack.c.l.b16 %v322
    %v362 = vunpack.c.l.b16 %v323
    %v363 = vunpack.c.l.b16 %v324
    %v364 = vunpack.c.l.b16 %v325
    %v365 = vunpack.c.l.b16 %v326
    %v366 = vunpack.c.l.b16 %v327
    %v367 = vunpack.c.l.b16 %v328
    %v368 = vunpack.c.l.b16 %v329
    %v369 = vunpack.c.l.b16 %v330
    %v370 = vunpack.c.l.b16 %v331
    %v371 = vunpack.c.l.b16 %v332
    %v372 = vunpack.c.l.b16 %v333
    %v373 = vunpack.c.l.b16 %v334
    %v374 = vunpack.c.l.b16 %v335
    %v375 = vunpack.c.l.b16 %v336
    %v376 = vpack.c.b16 %v361, %v360
    %v377 = vpack.c.b16 %v363, %v362
    %v378 = vpack.c.b16 %v365, %v364
    %v379 = vpack.c.b16 %v367, %v366
    %v380 = vpack.c.b16 %v369, %v368
    %v381 = vpack.c.b16 %v371, %v370
    %v382 = vpack.c.b16 %v373, %v372
    %v383 = vpack.c.b16 %v375, %v374
    %392 = vmatprep.subr.bf16.mxu0 0
    %393 = vmatpush1.bf16.msra.mxu0 %v383
    %394 = vmatprep.subr.bf16.mxu0 0
    %395 = vmatpush1.bf16.msra.mxu0 %v382
    %396 = vmatprep.subr.bf16.mxu0 0
    %397 = vmatpush1.bf16.msra.mxu0 %v381
    %398 = vmatprep.subr.bf16.mxu0 0
    %399 = vmatpush1.bf16.msra.mxu0 %v380
    %400 = vmatprep.subr.bf16.mxu0 0
    %401 = vmatpush1.bf16.msra.mxu0 %v379
    %402 = vmatprep.subr.bf16.mxu0 0
    %403 = vmatpush1.bf16.msra.mxu0 %v378
    %404 = vmatprep.subr.bf16.mxu0 0
    %405 = vmatpush1.bf16.msra.mxu0 %v377
    %406 = vmatprep.subr.bf16.mxu0 0
    %407 = vmatpush1.bf16.msra.mxu0 %v376
    %408 = vmatprep.subr.bf16.mxu0 0
    %409 = vmatpush2.bf16.msra.mxu0 0
    %410 = vmatprep.subr.bf16.mxu0 0
    %411 = vmatpush2.bf16.msra.mxu0 0
    %412 = vmatprep.subr.bf16.mxu0 0
    %413 = vmatpush2.bf16.msra.mxu0 0
    %414 = vmatprep.subr.bf16.mxu0 0
    %415 = vmatpush2.bf16.msra.mxu0 0
    %416 = vmatprep.subr.bf16.mxu0 0
    %417 = vmatpush2.bf16.msra.mxu0 0
    %418 = vmatprep.subr.bf16.mxu0 0
    %419 = vmatpush2.bf16.msra.mxu0 0
    %420 = vmatprep.subr.bf16.mxu0 0
    %421 = vmatpush2.bf16.msra.mxu0 0
    %422 = vmatprep.subr.bf16.mxu0 0
    %423 = vmatpush2.bf16.msra.mxu0 0
    %424 = vmatprep.mubr.bf16.mxu0 0
    %425 = vmatmul.mubr.bf16.gmra.mxu0 %v320
    %v426 = vpop.f32.mrf.mxu0
    %v427 = vadd.f32 %v342, %v426
    %v428 = vpop.f32.mrf.mxu0
    %v429 = vpop.f32.mrf.mxu0
    %v430 = vadd.f32 %v342, %v429
    %v431 = vpop.f32.mrf.mxu0
    %432 = vdwg.mxu0
    %433 = vst [vmem:[#allocation10] sm:$0xff] %v427
    %434 = vst [vmem:[#allocation10 + $0x8] sm:$0xff] %v430
    // Predicated region
    $region46: #{tpu_custom_call.1} parent=1 // pred_check
      _
    $region47: #{tpu_custom_call.1} parent=1 // pred_check_branch
      %436 = sbr.rel (0) target = $region49
    $region48: #{tpu_custom_call.1} parent=1 // pred_region
      %s438 = ssub.s32 256, 256
      %439 = vsyncadd [#allocation4], %s438
      %s440 = sshll.u32 [#allocation10], 4
      %s441 = int_to_ptr.vmem [resolvable:$true] %s440
      %446 = dma.vmem_to_hbm [thread:$0]  %s441, 256, %s7, [#allocation4], 128, 128, 8
    $region49: #{tpu_custom_call.1} parent=1 // pred_fallthru
      _
    // Predicated region
    $region50: #{tpu_custom_call.1} parent=1 // pred_check
      _
    $region51: #{tpu_custom_call.1} parent=1 // pred_check_branch
      %448 = sbr.rel (0) target = $region53
    $region52: #{tpu_custom_call.1} parent=1 // pred_region
      %449 = dma.done [#allocation4], 256
    $region53: #{tpu_custom_call.1} parent=1 // pred_fallthru
      _
    %450 = vsyncpa [#allocation3], 1
    %451 = vsyncpa [#allocation6], 1
    %452 = vsyncpa [#allocation9], 1
    %453 = vsyncpa [#allocation4], 1

</llo_original>
